<compile_context>
chip_gen: v5e
topology: v5e:2x2
jax: 0.10.0
libtpu: 0.0.40
codegen_flags: <defaults>
</compile_context>

<pallas_src>
import functools

import jax
import jax.numpy as jnp
from jax.experimental import pallas as pl
from jax.experimental.pallas import tpu as pltpu

BN_EPS = 1e-5


# ---------------------------------------------------------------------------
# Tiling helpers
# ---------------------------------------------------------------------------
def _tile_m(M, target=512):
    # Pixel-axis tile: big (amortizes per-grid-step overhead), remainder-safe
    # via a cdiv grid (out-of-bounds rows only affect dropped output rows).
    return M if M <= target else target


def _tile_n(C, target=512):
    # Output-column tile: a 128-aligned divisor of C (or full C).
    if C <= target:
        return C
    for t in (512, 384, 256, 128):
        if t <= target and C % t == 0:
            return t
    return C


def _tile_k(K, target=1024):
    # Reduction tile must divide K exactly (garbage in a padded K panel would
    # corrupt the accumulation).
    if K <= target:
        return K
    for t in (1024, 768, 512, 384, 256, 128):
        if K % t == 0:
            return t
    return K


def _vmem_limit(*block_bytes):
    # Estimate: double-buffered blocks + headroom for compiler scratch.
    est = 2 * sum(int(b) for b in block_bytes) + (4 << 20)
    if est <= (12 << 20):
        return None  # default scoped VMEM limit is plenty
    # Clamp to 48 MiB so it stays safe under v7x's 64 MiB physical VMEM.
    return int(min(48 << 20, max(32 << 20, est)))


# ---------------------------------------------------------------------------
# Pallas kernels
# ---------------------------------------------------------------------------
def _matmul_bn_act_kernel(x_ref, w_ref, s_ref, b_ref, o_ref, acc_ref, *, relu):
    """(tm,tk)@(tk,tn) accumulated over the K grid axis, fused BN (+ ReLU)."""
    @pl.when(pl.program_id(2) == 0)
    def _():
        acc_ref[...] = jnp.zeros_like(acc_ref)

    acc_ref[...] += jnp.dot(x_ref[...], w_ref[...],
                            preferred_element_type=jnp.float32)

    @pl.when(pl.program_id(2) == pl.num_programs(2) - 1)
    def _():
        out = acc_ref[...] * s_ref[...] + b_ref[...]
        if relu:
            out = jnp.maximum(out, 0.0)
        o_ref[...] = out.astype(o_ref.dtype)


def _conv3x3_bn_relu_kernel(xp_ref, w_ref, s_ref, b_ref, o_ref, *, Hout, Wout):
    """3x3 / stride-1 / pad-1 conv as 9 shifted matmuls (no HBM im2col)."""
    Cin = xp_ref.shape[-1]
    Cout = o_ref.shape[-1]
    xp = xp_ref[0]                                   # (Hout+2, Wout+2, Cin)
    acc = jnp.zeros((Hout * Wout, Cout), jnp.float32)
    for dy in range(3):
        for dx in range(3):
            win = xp[dy:dy + Hout, dx:dx + Wout, :]  # shifted tap window
            acc = acc + jnp.dot(win.reshape(Hout * Wout, Cin),
                                w_ref[dy * 3 + dx],
                                preferred_element_type=jnp.float32)
    out = acc * s_ref[...] + b_ref[...]
    o_ref[0] = jnp.maximum(out, 0.0).astype(o_ref.dtype)


def _conv3_proj_add_relu_kernel(x_ref, w3_ref, s3_ref, b3_ref,
                                xs_ref, wsc_ref, ssc_ref, bsc_ref, o_ref):
    """conv3 (1x1) + BN + fused projection-shortcut (1x1 conv + BN) + ReLU."""
    main = jnp.dot(x_ref[...], w3_ref[...], preferred_element_type=jnp.float32)
    main = main * s3_ref[...] + b3_ref[...]
    sc = jnp.dot(xs_ref[...], wsc_ref[...], preferred_element_type=jnp.float32)
    sc = sc * ssc_ref[...] + bsc_ref[...]
    o_ref[...] = jnp.maximum(main + sc, 0.0).astype(o_ref.dtype)


def _conv3_ident_add_relu_kernel(x_ref, w3_ref, s3_ref, b3_ref, res_ref, o_ref):
    """conv3 (1x1) + BN + identity residual + ReLU."""
    main = jnp.dot(x_ref[...], w3_ref[...], preferred_element_type=jnp.float32)
    out = main * s3_ref[...] + b3_ref[...] + res_ref[...].astype(jnp.float32)
    o_ref[...] = jnp.maximum(out, 0.0).astype(o_ref.dtype)


# ---------------------------------------------------------------------------
# Kernel wrappers
# ---------------------------------------------------------------------------
def matmul_bn_act(x2d, w, scale, bias, *, relu, out_dtype=jnp.bfloat16):
    """y = act((x2d @ w) * scale + bias) with (M, Cout, K) tiling."""
    M, K = x2d.shape
    Cout = w.shape[1]
    tm, tn, tk = _tile_m(M), _tile_n(Cout), _tile_k(K)
    grid = (pl.cdiv(M, tm), pl.cdiv(Cout, tn), K // tk)

    vlim = _vmem_limit(tm * tk * x2d.dtype.itemsize,
                       tk * tn * w.dtype.itemsize,
                       2 * tn * 4,
                       tm * tn * jnp.dtype(out_dtype).itemsize,
                       tm * tn * 4)
    return pl.pallas_call(
        functools.partial(_matmul_bn_act_kernel, relu=relu),
        grid=grid,
        in_specs=[
            pl.BlockSpec((tm, tk), lambda i, j, k: (i, k)),
            pl.BlockSpec((tk, tn), lambda i, j, k: (k, j)),
            pl.BlockSpec((1, tn), lambda i, j, k: (0, j)),
            pl.BlockSpec((1, tn), lambda i, j, k: (0, j)),
        ],
        out_specs=pl.BlockSpec((tm, tn), lambda i, j, k: (i, j)),
        out_shape=jax.ShapeDtypeStruct((M, Cout), out_dtype),
        scratch_shapes=[pltpu.VMEM((tm, tn), jnp.float32)],
        compiler_params=pltpu.CompilerParams(
            dimension_semantics=("parallel", "parallel", "arbitrary"),
            vmem_limit_bytes=vlim),
    )(x2d, w,
      scale.reshape(1, Cout).astype(jnp.float32),
      bias.reshape(1, Cout).astype(jnp.float32))


def conv3x3_bn_relu(x_nhwc, w_oihw, scale, bias):
    """Stride-1 3x3 conv (pad 1) + BN + ReLU, one image per grid step."""
    N, H, W, Cin = x_nhwc.shape
    Cout = w_oihw.shape[0]
    xp = jnp.pad(x_nhwc, ((0, 0), (1, 1), (1, 1), (0, 0)))
    w = jnp.transpose(w_oihw, (2, 3, 1, 0)).reshape(9, Cin, Cout)
    w = w.astype(x_nhwc.dtype)

    vlim = _vmem_limit((H + 2) * (W + 2) * Cin * xp.dtype.itemsize,
                       9 * Cin * Cout * w.dtype.itemsize,
                       2 * Cout * 4,
                       H * W * Cout * 2,
                       H * W * Cout * 4)
    out = pl.pallas_call(
        functools.partial(_conv3x3_bn_relu_kernel, Hout=H, Wout=W),
        grid=(N,),
        in_specs=[
            pl.BlockSpec((1, H + 2, W + 2, Cin), lambda n: (n, 0, 0, 0)),
            pl.BlockSpec((9, Cin, Cout), lambda n: (0, 0, 0)),
            pl.BlockSpec((1, Cout), lambda n: (0, 0)),
            pl.BlockSpec((1, Cout), lambda n: (0, 0)),
        ],
        out_specs=pl.BlockSpec((1, H * W, Cout), lambda n: (n, 0, 0)),
        out_shape=jax.ShapeDtypeStruct((N, H * W, Cout), jnp.bfloat16),
        compiler_params=pltpu.CompilerParams(
            dimension_semantics=("parallel",), vmem_limit_bytes=vlim),
    )(xp, w,
      scale.reshape(1, Cout).astype(jnp.float32),
      bias.reshape(1, Cout).astype(jnp.float32))
    return out.reshape(N * H * W, Cout)


def conv1x1_bn_add_relu(x2d, w3, s3, b3, *, xs2d=None, wsc=None, ssc=None,
                        bsc=None, residual=None):
    """Fused conv3 (1x1) + BN + (projection shortcut | identity) + add + ReLU."""
    M, K3 = x2d.shape
    Cout = w3.shape[1]
    tm, tn = _tile_m(M), _tile_n(Cout)
    grid = (pl.cdiv(M, tm), pl.cdiv(Cout, tn))
    s3 = s3.reshape(1, Cout).astype(jnp.float32)
    b3 = b3.reshape(1, Cout).astype(jnp.float32)

    if wsc is not None:
        Ksc = xs2d.shape[1]
        in_specs = [
            pl.BlockSpec((tm, K3), lambda i, j: (i, 0)),
            pl.BlockSpec((K3, tn), lambda i, j: (0, j)),
            pl.BlockSpec((1, tn), lambda i, j: (0, j)),
            pl.BlockSpec((1, tn), lambda i, j: (0, j)),
            pl.BlockSpec((tm, Ksc), lambda i, j: (i, 0)),
            pl.BlockSpec((Ksc, tn), lambda i, j: (0, j)),
            pl.BlockSpec((1, tn), lambda i, j: (0, j)),
            pl.BlockSpec((1, tn), lambda i, j: (0, j)),
        ]
        args = [x2d, w3, s3, b3, xs2d, wsc,
                ssc.reshape(1, Cout).astype(jnp.float32),
                bsc.reshape(1, Cout).astype(jnp.float32)]
        kernel = _conv3_proj_add_relu_kernel
        vlim = _vmem_limit(tm * K3 * x2d.dtype.itemsize,
                           K3 * tn * w3.dtype.itemsize,
                           tm * Ksc * xs2d.dtype.itemsize,
                           Ksc * tn * wsc.dtype.itemsize,
                           4 * tn * 4, tm * tn * 4)
    else:
        in_specs = [
            pl.BlockSpec((tm, K3), lambda i, j: (i, 0)),
            pl.BlockSpec((K3, tn), lambda i, j: (0, j)),
            pl.BlockSpec((1, tn), lambda i, j: (0, j)),
            pl.BlockSpec((1, tn), lambda i, j: (0, j)),
            pl.BlockSpec((tm, tn), lambda i, j: (i, j)),
        ]
        args = [x2d, w3, s3, b3, residual]
        kernel = _conv3_ident_add_relu_kernel
        vlim = _vmem_limit(tm * K3 * x2d.dtype.itemsize,
                           K3 * tn * w3.dtype.itemsize,
                           2 * tn * 4,
                           tm * tn * residual.dtype.itemsize,
                           tm * tn * 4)

    return pl.pallas_call(
        kernel,
        grid=grid,
        in_specs=in_specs,
        out_specs=pl.BlockSpec((tm, tn), lambda i, j: (i, j)),
        out_shape=jax.ShapeDtypeStruct((M, Cout), jnp.float32),
        compiler_params=pltpu.CompilerParams(
            dimension_semantics=("parallel", "parallel"),
            vmem_limit_bytes=vlim),
    )(*args)


# ---------------------------------------------------------------------------
# Bottleneck forward (Pallas)
# ---------------------------------------------------------------------------
def _fold_bn(gamma, beta, mean, var):
    scale = gamma / jnp.sqrt(var + BN_EPS)
    bias = beta - mean * scale
    return scale, bias


def bottleneck_pallas(x_nchw, params, stride=1):
    N, Cin, H, W = x_nchw.shape
    planes = params["conv1_w"].shape[0]
    Cexp = 4 * planes
    has_proj = (stride != 1) or (Cin != Cexp)

    x = jnp.transpose(x_nchw, (0, 2, 3, 1)).astype(jnp.float32)   # NHWC
    xb = x.astype(jnp.bfloat16)                                   # matmul operands

    s1, b1 = _fold_bn(*params["bn1"])
    s2, b2 = _fold_bn(*params["bn2"])
    s3, b3 = _fold_bn(*params["bn3"])

    # ---- conv1: 1x1 -> tiled pixel-major matmul, fused BN + ReLU ----
    w1 = params["conv1_w"][:, :, 0, 0].T.astype(jnp.bfloat16)     # (Cin, planes)
    out1 = matmul_bn_act(xb.reshape(-1, Cin), w1, s1, b1, relu=True)
    out1 = out1.reshape(N, H, W, planes)

    # ---- conv2: 3x3, stride s, pad 1, fused BN + ReLU ----
    Hout = (H - 1) // stride + 1
    Wout = (W - 1) // stride + 1
    if stride == 1:
        out2 = conv3x3_bn_relu(out1, params["conv2_w"], s2, b2)   # no HBM im2col
    else:
        # TODO(synk): stride>1 path still materializes im2col in HBM; only the
        # stride-1 path (the module default) is fully fused.
        xp = jnp.pad(out1, ((0, 0), (1, 1), (1, 1), (0, 0)))
        patches = []
        for dy in range(3):
            for dx in range(3):
                patches.append(
                    xp[:, dy:dy + stride * (Hout - 1) + 1:stride,
                          dx:dx + stride * (Wout - 1) + 1:stride, :])
        cols = jnp.concatenate(patches, axis=-1).reshape(-1, 9 * planes)
        w2 = jnp.transpose(params["conv2_w"], (2, 3, 1, 0)).reshape(
            9 * planes, planes).astype(jnp.bfloat16)
        out2 = matmul_bn_act(cols, w2, s2, b2, relu=True)

    # ---- conv3 (+ shortcut) fused: matmul + BN + residual add + ReLU ----
    w3 = params["conv3_w"][:, :, 0, 0].T.astype(jnp.bfloat16)     # (planes, Cexp)
    if has_proj:
        ssc, bsc = _fold_bn(*params["bn_sc"])
        wsc = params["sc_w"][:, :, 0, 0].T.astype(jnp.bfloat16)   # (Cin, Cexp)
        xs = xb if stride == 1 else xb[:, ::stride, ::stride, :]
        out3 = conv1x1_bn_add_relu(out2, w3, s3, b3,
                                   xs2d=xs.reshape(-1, Cin), wsc=wsc,
                                   ssc=ssc, bsc=bsc)
    else:
        out3 = conv1x1_bn_add_relu(out2, w3, s3, b3,
                                   residual=x.reshape(-1, Cexp))

    out = out3.reshape(N, Hout, Wout, Cexp)
    return jnp.transpose(out, (0, 3, 1, 2))                       # back to NCHW


# ---------------------------------------------------------------------------
# Pure-JAX reference (lax.conv) for verification
# ---------------------------------------------------------------------------
def bottleneck_ref(x_nchw, params, stride=1):
    x = jnp.transpose(x_nchw, (0, 2, 3, 1)).astype(jnp.float32)

    def conv(h, w_oihw, s=1, pad=0):
        w = jnp.transpose(w_oihw, (2, 3, 1, 0))  # HWIO
        return jax.lax.conv_general_dilated(
            h, w, (s, s), [(pad, pad), (pad, pad)],
            dimension_numbers=("NHWC", "HWIO", "NHWC"))

    def bn(h, g, b, m, v):
        return (h - m) / jnp.sqrt(v + BN_EPS) * g + b

    planes = params["conv1_w"].shape[0]
    out = jax.nn.relu(bn(conv(x, params["conv1_w"]), *params["bn1"]))
    out = jax.nn.relu(bn(conv(out, params["conv2_w"], stride, 1), *params["bn2"]))
    out = bn(conv(out, params["conv3_w"]), *params["bn3"])
    if stride != 1 or x.shape[-1] != 4 * planes:
        sc = bn(conv(x, params["sc_w"], stride), *params["bn_sc"])
    else:
        sc = x
    out = jax.nn.relu(out + sc)
    return jnp.transpose(out, (0, 3, 1, 2))


# ---------------------------------------------------------------------------
# Deterministic parameter construction
# ---------------------------------------------------------------------------
def make_params(key, in_planes, planes):
    expansion = 4
    ks = jax.random.split(key, 20)

    def conv_w(k, cout, cin, kh, kw):
        return jax.random.normal(k, (cout, cin, kh, kw), jnp.float32) * 0.1

    def bn_p(k, c):
        k1, k2, k3, k4 = jax.random.split(k, 4)
        gamma = jax.random.uniform(k1, (c,), jnp.float32, 0.5, 1.5)
        beta = jax.random.normal(k2, (c,), jnp.float32) * 0.1
        mean = jax.random.normal(k3, (c,), jnp.float32) * 0.1
        var = jax.random.uniform(k4, (c,), jnp.float32, 0.5, 1.5)
        return (gamma, beta, mean, var)

    return {
        "conv1_w": conv_w(ks[0], planes, in_planes, 1, 1),
        "bn1": bn_p(ks[1], planes),
        "conv2_w": conv_w(ks[2], planes, planes, 3, 3),
        "bn2": bn_p(ks[3], planes),
        "conv3_w": conv_w(ks[4], expansion * planes, planes, 1, 1),
        "bn3": bn_p(ks[5], expansion * planes),
        "sc_w": conv_w(ks[6], expansion * planes, in_planes, 1, 1),
        "bn_sc": bn_p(ks[7], expansion * planes),
    }


if __name__ == "__main__":
    key = jax.random.PRNGKey(0)
    k_x, k_p = jax.random.split(key)

    N, in_planes, planes, H, W, stride = 2, 4, 4, 16, 16, 1
    x = jax.random.normal(k_x, (N, in_planes, H, W), jnp.float32)
    params = make_params(k_p, in_planes, planes)

    out = jax.block_until_ready(bottleneck_pallas(x, params, stride=stride))
    ref = jax.block_until_ready(bottleneck_ref(x, params, stride=stride))

    assert out.shape == (N, 4 * planes, H, W), out.shape
    max_err = float(jnp.max(jnp.abs(out - ref)))
    # bf16 matmul operands (f32 accumulation) -> looser tolerance vs f32 ref.
    assert jnp.allclose(out, ref, atol=3e-2, rtol=3e-2), max_err
    print("KERNEL_OK")
</pallas_src>

<mosaic_0001>
module attributes {stable_mosaic.version = 11 : i64} {
  func.func @_matmul_bn_act_kernel(%arg0: i32, %arg1: i32, %arg2: i32, %arg3: memref<512x4xbf16, #tpu.memory_space<vmem>>, %arg4: memref<4x4xbf16, #tpu.memory_space<vmem>>, %arg5: memref<1x4xf32, #tpu.memory_space<vmem>>, %arg6: memref<1x4xf32, #tpu.memory_space<vmem>>, %arg7: memref<512x4xbf16, #tpu.memory_space<vmem>>, %arg8: memref<512x4xf32, #tpu.memory_space<vmem>>) attributes {dimension_semantics = [#tpu.dimension_semantics<parallel>, #tpu.dimension_semantics<parallel>, #tpu.dimension_semantics<arbitrary>], iteration_bounds = array<i64: 1, 1, 1>, scalar_prefetch = 0 : i64, scratch_operands = 1 : i64, tpu.core_type = #tpu.core_type<tc>, window_params = [{transform_indices = @transform_0, window_bounds = array<i64: 512, 4>}, {transform_indices = @transform_1, window_bounds = array<i64: 4, 4>}, {transform_indices = @transform_2, window_bounds = array<i64: 1, 4>}, {transform_indices = @transform_3, window_bounds = array<i64: 1, 4>}, {transform_indices = @transform_4, window_bounds = array<i64: 512, 4>}]} {
    %c0_i32 = arith.constant 0 : i32
    %0 = arith.cmpi eq, %arg2, %c0_i32 : i32
    %1 = arith.extui %0 : i1 to i32
    %c0_i32_0 = arith.constant 0 : i32
    %2 = arith.cmpi ne, %1, %c0_i32_0 : i32
    scf.if %2 {
      %cst_10 = arith.constant 0.000000e+00 : f32
      %12 = vector.broadcast %cst_10 : f32 to vector<512x4xf32>
      %c0_11 = arith.constant 0 : index
      %c0_12 = arith.constant 0 : index
      %13 = vector.load %arg8[%c0_11, %c0_12] : memref<512x4xf32, #tpu.memory_space<vmem>>, vector<512x4xf32>
      tpu.vector_store %arg8[%c0_11, %c0_12], %12 {strides = array<i32>} : memref<512x4xf32, #tpu.memory_space<vmem>>, vector<512x4xf32>,
    } else {
    }
    %c0 = arith.constant 0 : index
    %c0_1 = arith.constant 0 : index
    %3 = vector.load %arg8[%c0, %c0_1] : memref<512x4xf32, #tpu.memory_space<vmem>>, vector<512x4xf32>
    %c0_2 = arith.constant 0 : index
    %c0_3 = arith.constant 0 : index
    %4 = vector.load %arg3[%c0_2, %c0_3] : memref<512x4xbf16, #tpu.memory_space<vmem>>, vector<512x4xbf16>
    %c0_4 = arith.constant 0 : index
    %c0_5 = arith.constant 0 : index
    %5 = vector.load %arg4[%c0_4, %c0_5] : memref<4x4xbf16, #tpu.memory_space<vmem>>, vector<4x4xbf16>
    %cst = arith.constant dense<0.000000e+00> : vector<512x4xf32>
    %6 = tpu.matmul %4, %5, %cst {dimension_numbers = #tpu.dot_dimension_numbers<[1], [0], [0], [1], [0, 0, 1, 1], [], []>} : vector<512x4xbf16>, vector<4x4xbf16>, vector<512x4xf32> -> vector<512x4xf32>
    %7 = arith.addf %3, %6 : vector<512x4xf32>
    %c0_6 = arith.constant 0 : index
    %c0_7 = arith.constant 0 : index
    %8 = vector.load %arg8[%c0_6, %c0_7] : memref<512x4xf32, #tpu.memory_space<vmem>>, vector<512x4xf32>
    tpu.vector_store %arg8[%c0_6, %c0_7], %7 {strides = array<i32>} : memref<512x4xf32, #tpu.memory_space<vmem>>, vector<512x4xf32>,
    %c0_i32_8 = arith.constant 0 : i32
    %9 = arith.cmpi eq, %arg2, %c0_i32_8 : i32
    %10 = arith.extui %9 : i1 to i32
    %c0_i32_9 = arith.constant 0 : i32
    %11 = arith.cmpi ne, %10, %c0_i32_9 : i32
    scf.if %11 {
      %c0_10 = arith.constant 0 : index
      %c0_11 = arith.constant 0 : index
      %12 = vector.load %arg8[%c0_10, %c0_11] : memref<512x4xf32, #tpu.memory_space<vmem>>, vector<512x4xf32>
      %c0_12 = arith.constant 0 : index
      %c0_13 = arith.constant 0 : index
      %13 = vector.load %arg5[%c0_12, %c0_13] : memref<1x4xf32, #tpu.memory_space<vmem>>, vector<1x4xf32>
      %14 = vector.broadcast %13 : vector<1x4xf32> to vector<512x4xf32>
      %15 = arith.mulf %12, %14 : vector<512x4xf32>
      %c0_14 = arith.constant 0 : index
      %c0_15 = arith.constant 0 : index
      %16 = vector.load %arg6[%c0_14, %c0_15] : memref<1x4xf32, #tpu.memory_space<vmem>>, vector<1x4xf32>
      %17 = vector.broadcast %16 : vector<1x4xf32> to vector<512x4xf32>
      %18 = arith.addf %15, %17 : vector<512x4xf32>
      %cst_16 = arith.constant 0.000000e+00 : f32
      %19 = vector.broadcast %cst_16 : f32 to vector<512x4xf32>
      %20 = arith.maximumf %18, %19 : vector<512x4xf32>
      %21 = arith.truncf %20 : vector<512x4xf32> to vector<512x4xbf16>
      %c0_17 = arith.constant 0 : index
      %c0_18 = arith.constant 0 : index
      %22 = vector.load %arg7[%c0_17, %c0_18] : memref<512x4xbf16, #tpu.memory_space<vmem>>, vector<512x4xbf16>
      tpu.vector_store %arg7[%c0_17, %c0_18], %21 {strides = array<i32>} : memref<512x4xbf16, #tpu.memory_space<vmem>>, vector<512x4xbf16>,
    } else {
    }
    return
  }
  func.func @transform_0(%arg0: i32, %arg1: i32, %arg2: i32) -> (i32, i32) {
    %c0_i32 = arith.constant 0 : i32
    return %arg0, %arg2 : i32, i32
  }
  func.func @transform_1(%arg0: i32, %arg1: i32, %arg2: i32) -> (i32, i32) {
    %c0_i32 = arith.constant 0 : i32
    return %arg2, %arg1 : i32, i32
  }
  func.func @transform_2(%arg0: i32, %arg1: i32, %arg2: i32) -> (i32, i32) {
    %c0_i32 = arith.constant 0 : i32
    %c0_i32_0 = arith.constant 0 : i32
    return %c0_i32, %arg1 : i32, i32
  }
  func.func @transform_3(%arg0: i32, %arg1: i32, %arg2: i32) -> (i32, i32) {
    %c0_i32 = arith.constant 0 : i32
    %c0_i32_0 = arith.constant 0 : i32
    return %c0_i32, %arg1 : i32, i32
  }
  func.func @transform_4(%arg0: i32, %arg1: i32, %arg2: i32) -> (i32, i32) {
    %c0_i32 = arith.constant 0 : i32
    return %arg0, %arg1 : i32, i32
  }
}

</mosaic_0001>

<llo_original>
// kernel: tpu_custom_call.1
$region0: #{tpu_custom_call.1}
  #allocation0 [shape = 'u32[]', space=smem, size = 0x4, offset = 0x4, fixed_abs, tag = 'smem constant byte address 0x4 - core index']
  #allocation1 [shape = 'u32[72,128]{1,0:T(1,128)}', space=vmem, size = 0x9000, scoped, tag = 'internal scratch']
  #allocation2 [shape = 'f32[512,4]{1,0:T(8,128)}', space=vmem, size = 0x40000, scoped, tag = 'scratch operand']
  %s0 = inlined_call_operand.vmem [shape: bf16[512,4], index: 0, kind: input, shape index: {}]
  %s1 = inlined_call_operand.vmem [shape: bf16[4,4], index: 1, kind: input, shape index: {}]
  %s2 = inlined_call_operand.vmem [shape: f32[1,4], index: 2, kind: input, shape index: {}]
  %s3 = inlined_call_operand.vmem [shape: f32[1,4], index: 3, kind: input, shape index: {}]
  %s4 = inlined_call_operand.vmem [shape: bf16[512,4], index: 4, kind: output, shape index: {}]
  %s5 = sld [smem:[#allocation0]]
  $region34: #{tpu_custom_call.1} parent=0
    _
  %s7 = ssub.s32 1, %s5
  %s8 = scalar_select 0, %s7, %s5
  // Predicated region
  $region2: #{tpu_custom_call.1} parent=0 // pred_check
    _
  $region3: #{tpu_custom_call.1} parent=0 // pred_check_branch
    %10 = sbr.rel (0) target = $region5
  $region4: #{tpu_custom_call.1} parent=0 // pred_region
    _
  $region5: #{tpu_custom_call.1} parent=0 // pred_fallthru
    _
  // Predicated region
  $region6: #{tpu_custom_call.1} parent=0 // pred_check
    _
  $region7: #{tpu_custom_call.1} parent=0 // pred_check_branch
    %12 = sbr.rel (0) target = $region9
  $region8: #{tpu_custom_call.1} parent=0 // pred_region
    _
  $region9: #{tpu_custom_call.1} parent=0 // pred_fallthru
    _
  // Predicated region
  $region10: #{tpu_custom_call.1} parent=0 // pred_check
    _
  $region11: #{tpu_custom_call.1} parent=0 // pred_check_branch
    %14 = sbr.rel (0) target = $region13
  $region12: #{tpu_custom_call.1} parent=0 // pred_region
    _
  $region13: #{tpu_custom_call.1} parent=0 // pred_fallthru
    _
  // Predicated region
  $region14: #{tpu_custom_call.1} parent=0 // pred_check
    _
  $region15: #{tpu_custom_call.1} parent=0 // pred_check_branch
    %16 = sbr.rel (0) target = $region17
  $region16: #{tpu_custom_call.1} parent=0 // pred_region
    _
  $region17: #{tpu_custom_call.1} parent=0 // pred_fallthru
    _
  %p18 = scmp.eq.s32.totalorder 0, 0
  // Predicated region
  $region18: #{tpu_custom_call.1} parent=0 // pred_check
    %p19 = pneg %p18
  $region19: #{tpu_custom_call.1} parent=0 // pred_check_branch
    %21 = sbr.rel (%p19) target = $region21
  $region20: #{tpu_custom_call.1} parent=0 // pred_region
    %vm22 = vcmask 31744
    %23 = vst.msk [vmem:[#allocation2] sm:$0xff] %vm22, 0.0
    %24 = vst.msk [vmem:[#allocation2 + $0x8] sm:$0xff] %vm22, 0.0
    %25 = vst.msk [vmem:[#allocation2 + $0x10] sm:$0xff] %vm22, 0.0
    %26 = vst.msk [vmem:[#allocation2 + $0x18] sm:$0xff] %vm22, 0.0
    %27 = vst.msk [vmem:[#allocation2 + $0x20] sm:$0xff] %vm22, 0.0
    %28 = vst.msk [vmem:[#allocation2 + $0x28] sm:$0xff] %vm22, 0.0
    %29 = vst.msk [vmem:[#allocation2 + $0x30] sm:$0xff] %vm22, 0.0
    %30 = vst.msk [vmem:[#allocation2 + $0x38] sm:$0xff] %vm22, 0.0
    %31 = vst.msk [vmem:[#allocation2 + $0x40] sm:$0xff] %vm22, 0.0
    %32 = vst.msk [vmem:[#allocation2 + $0x48] sm:$0xff] %vm22, 0.0
    %33 = vst.msk [vmem:[#allocation2 + $0x50] sm:$0xff] %vm22, 0.0
    %34 = vst.msk [vmem:[#allocation2 + $0x58] sm:$0xff] %vm22, 0.0
    %35 = vst.msk [vmem:[#allocation2 + $0x60] sm:$0xff] %vm22, 0.0
    %36 = vst.msk [vmem:[#allocation2 + $0x68] sm:$0xff] %vm22, 0.0
    %37 = vst.msk [vmem:[#allocation2 + $0x70] sm:$0xff] %vm22, 0.0
    %38 = vst.msk [vmem:[#allocation2 + $0x78] sm:$0xff] %vm22, 0.0
    %39 = vst.msk [vmem:[#allocation2 + $0x80] sm:$0xff] %vm22, 0.0
    %40 = vst.msk [vmem:[#allocation2 + $0x88] sm:$0xff] %vm22, 0.0
    %41 = vst.msk [vmem:[#allocation2 + $0x90] sm:$0xff] %vm22, 0.0
    %42 = vst.msk [vmem:[#allocation2 + $0x98] sm:$0xff] %vm22, 0.0
    %43 = vst.msk [vmem:[#allocation2 + $0xa0] sm:$0xff] %vm22, 0.0
    %44 = vst.msk [vmem:[#allocation2 + $0xa8] sm:$0xff] %vm22, 0.0
    %45 = vst.msk [vmem:[#allocation2 + $0xb0] sm:$0xff] %vm22, 0.0
    %46 = vst.msk [vmem:[#allocation2 + $0xb8] sm:$0xff] %vm22, 0.0
    %47 = vst.msk [vmem:[#allocation2 + $0xc0] sm:$0xff] %vm22, 0.0
    %48 = vst.msk [vmem:[#allocation2 + $0xc8] sm:$0xff] %vm22, 0.0
    %49 = vst.msk [vmem:[#allocation2 + $0xd0] sm:$0xff] %vm22, 0.0
    %50 = vst.msk [vmem:[#allocation2 + $0xd8] sm:$0xff] %vm22, 0.0
    %51 = vst.msk [vmem:[#allocation2 + $0xe0] sm:$0xff] %vm22, 0.0
    %52 = vst.msk [vmem:[#allocation2 + $0xe8] sm:$0xff] %vm22, 0.0
    %53 = vst.msk [vmem:[#allocation2 + $0xf0] sm:$0xff] %vm22, 0.0
    %54 = vst.msk [vmem:[#allocation2 + $0xf8] sm:$0xff] %vm22, 0.0
    %55 = vst.msk [vmem:[#allocation2 + $0x100] sm:$0xff] %vm22, 0.0
    %56 = vst.msk [vmem:[#allocation2 + $0x108] sm:$0xff] %vm22, 0.0
    %57 = vst.msk [vmem:[#allocation2 + $0x110] sm:$0xff] %vm22, 0.0
    %58 = vst.msk [vmem:[#allocation2 + $0x118] sm:$0xff] %vm22, 0.0
    %59 = vst.msk [vmem:[#allocation2 + $0x120] sm:$0xff] %vm22, 0.0
    %60 = vst.msk [vmem:[#allocation2 + $0x128] sm:$0xff] %vm22, 0.0
    %61 = vst.msk [vmem:[#allocation2 + $0x130] sm:$0xff] %vm22, 0.0
    %62 = vst.msk [vmem:[#allocation2 + $0x138] sm:$0xff] %vm22, 0.0
    %63 = vst.msk [vmem:[#allocation2 + $0x140] sm:$0xff] %vm22, 0.0
    %64 = vst.msk [vmem:[#allocation2 + $0x148] sm:$0xff] %vm22, 0.0
    %65 = vst.msk [vmem:[#allocation2 + $0x150] sm:$0xff] %vm22, 0.0
    %66 = vst.msk [vmem:[#allocation2 + $0x158] sm:$0xff] %vm22, 0.0
    %67 = vst.msk [vmem:[#allocation2 + $0x160] sm:$0xff] %vm22, 0.0
    %68 = vst.msk [vmem:[#allocation2 + $0x168] sm:$0xff] %vm22, 0.0
    %69 = vst.msk [vmem:[#allocation2 + $0x170] sm:$0xff] %vm22, 0.0
    %70 = vst.msk [vmem:[#allocation2 + $0x178] sm:$0xff] %vm22, 0.0
    %71 = vst.msk [vmem:[#allocation2 + $0x180] sm:$0xff] %vm22, 0.0
    %72 = vst.msk [vmem:[#allocation2 + $0x188] sm:$0xff] %vm22, 0.0
    %73 = vst.msk [vmem:[#allocation2 + $0x190] sm:$0xff] %vm22, 0.0
    %74 = vst.msk [vmem:[#allocation2 + $0x198] sm:$0xff] %vm22, 0.0
    %75 = vst.msk [vmem:[#allocation2 + $0x1a0] sm:$0xff] %vm22, 0.0
    %76 = vst.msk [vmem:[#allocation2 + $0x1a8] sm:$0xff] %vm22, 0.0
    %77 = vst.msk [vmem:[#allocation2 + $0x1b0] sm:$0xff] %vm22, 0.0
    %78 = vst.msk [vmem:[#allocation2 + $0x1b8] sm:$0xff] %vm22, 0.0
    %79 = vst.msk [vmem:[#allocation2 + $0x1c0] sm:$0xff] %vm22, 0.0
    %80 = vst.msk [vmem:[#allocation2 + $0x1c8] sm:$0xff] %vm22, 0.0
    %81 = vst.msk [vmem:[#allocation2 + $0x1d0] sm:$0xff] %vm22, 0.0
    %82 = vst.msk [vmem:[#allocation2 + $0x1d8] sm:$0xff] %vm22, 0.0
    %83 = vst.msk [vmem:[#allocation2 + $0x1e0] sm:$0xff] %vm22, 0.0
    %84 = vst.msk [vmem:[#allocation2 + $0x1e8] sm:$0xff] %vm22, 0.0
    %85 = vst.msk [vmem:[#allocation2 + $0x1f0] sm:$0xff] %vm22, 0.0
    %86 = vst.msk [vmem:[#allocation2 + $0x1f8] sm:$0xff] %vm22, 0.0
  $region21: #{tpu_custom_call.1} parent=0 // pred_fallthru
    _
  %v87 = vld [vmem:[#allocation2] sm:$0xff]
  %v88 = vld [vmem:[#allocation2 + $0x8] sm:$0xff]
  %v89 = vld [vmem:[#allocation2 + $0x10] sm:$0xff]
  %v90 = vld [vmem:[#allocation2 + $0x18] sm:$0xff]
  %v91 = vld [vmem:[#allocation2 + $0x20] sm:$0xff]
  %v92 = vld [vmem:[#allocation2 + $0x28] sm:$0xff]
  %v93 = vld [vmem:[#allocation2 + $0x30] sm:$0xff]
  %v94 = vld [vmem:[#allocation2 + $0x38] sm:$0xff]
  %v95 = vld [vmem:[#allocation2 + $0x40] sm:$0xff]
  %v96 = vld [vmem:[#allocation2 + $0x48] sm:$0xff]
  %v97 = vld [vmem:[#allocation2 + $0x50] sm:$0xff]
  %v98 = vld [vmem:[#allocation2 + $0x58] sm:$0xff]
  %v99 = vld [vmem:[#allocation2 + $0x60] sm:$0xff]
  %v100 = vld [vmem:[#allocation2 + $0x68] sm:$0xff]
  %v101 = vld [vmem:[#allocation2 + $0x70] sm:$0xff]
  %v102 = vld [vmem:[#allocation2 + $0x78] sm:$0xff]
  %v103 = vld [vmem:[#allocation2 + $0x80] sm:$0xff]
  %v104 = vld [vmem:[#allocation2 + $0x88] sm:$0xff]
  %v105 = vld [vmem:[#allocation2 + $0x90] sm:$0xff]
  %v106 = vld [vmem:[#allocation2 + $0x98] sm:$0xff]
  %v107 = vld [vmem:[#allocation2 + $0xa0] sm:$0xff]
  %v108 = vld [vmem:[#allocation2 + $0xa8] sm:$0xff]
  %v109 = vld [vmem:[#allocation2 + $0xb0] sm:$0xff]
  %v110 = vld [vmem:[#allocation2 + $0xb8] sm:$0xff]
  %v111 = vld [vmem:[#allocation2 + $0xc0] sm:$0xff]
  %v112 = vld [vmem:[#allocation2 + $0xc8] sm:$0xff]
  %v113 = vld [vmem:[#allocation2 + $0xd0] sm:$0xff]
  %v114 = vld [vmem:[#allocation2 + $0xd8] sm:$0xff]
  %v115 = vld [vmem:[#allocation2 + $0xe0] sm:$0xff]
  %v116 = vld [vmem:[#allocation2 + $0xe8] sm:$0xff]
  %v117 = vld [vmem:[#allocation2 + $0xf0] sm:$0xff]
  %v118 = vld [vmem:[#allocation2 + $0xf8] sm:$0xff]
  %v119 = vld [vmem:[#allocation2 + $0x100] sm:$0xff]
  %v120 = vld [vmem:[#allocation2 + $0x108] sm:$0xff]
  %v121 = vld [vmem:[#allocation2 + $0x110] sm:$0xff]
  %v122 = vld [vmem:[#allocation2 + $0x118] sm:$0xff]
  %v123 = vld [vmem:[#allocation2 + $0x120] sm:$0xff]
  %v124 = vld [vmem:[#allocation2 + $0x128] sm:$0xff]
  %v125 = vld [vmem:[#allocation2 + $0x130] sm:$0xff]
  %v126 = vld [vmem:[#allocation2 + $0x138] sm:$0xff]
  %v127 = vld [vmem:[#allocation2 + $0x140] sm:$0xff]
  %v128 = vld [vmem:[#allocation2 + $0x148] sm:$0xff]
  %v129 = vld [vmem:[#allocation2 + $0x150] sm:$0xff]
  %v130 = vld [vmem:[#allocation2 + $0x158] sm:$0xff]
  %v131 = vld [vmem:[#allocation2 + $0x160] sm:$0xff]
  %v132 = vld [vmem:[#allocation2 + $0x168] sm:$0xff]
  %v133 = vld [vmem:[#allocation2 + $0x170] sm:$0xff]
  %v134 = vld [vmem:[#allocation2 + $0x178] sm:$0xff]
  %v135 = vld [vmem:[#allocation2 + $0x180] sm:$0xff]
  %v136 = vld [vmem:[#allocation2 + $0x188] sm:$0xff]
  %v137 = vld [vmem:[#allocation2 + $0x190] sm:$0xff]
  %v138 = vld [vmem:[#allocation2 + $0x198] sm:$0xff]
  %v139 = vld [vmem:[#allocation2 + $0x1a0] sm:$0xff]
  %v140 = vld [vmem:[#allocation2 + $0x1a8] sm:$0xff]
  %v141 = vld [vmem:[#allocation2 + $0x1b0] sm:$0xff]
  %v142 = vld [vmem:[#allocation2 + $0x1b8] sm:$0xff]
  %v143 = vld [vmem:[#allocation2 + $0x1c0] sm:$0xff]
  %v144 = vld [vmem:[#allocation2 + $0x1c8] sm:$0xff]
  %v145 = vld [vmem:[#allocation2 + $0x1d0] sm:$0xff]
  %v146 = vld [vmem:[#allocation2 + $0x1d8] sm:$0xff]
  %v147 = vld [vmem:[#allocation2 + $0x1e0] sm:$0xff]
  %v148 = vld [vmem:[#allocation2 + $0x1e8] sm:$0xff]
  %v149 = vld [vmem:[#allocation2 + $0x1f0] sm:$0xff]
  %v150 = vld [vmem:[#allocation2 + $0x1f8] sm:$0xff]
  %v151 = vld [vmem:[%s0] sm:$0xf]
  %v152 = vld [vmem:[%s0 + $0x4] sm:$0xf]
  %v153 = vld [vmem:[%s0 + $0x8] sm:$0xf]
  %v154 = vld [vmem:[%s0 + $0xc] sm:$0xf]
  %v155 = vld [vmem:[%s0 + $0x10] sm:$0xf]
  %v156 = vld [vmem:[%s0 + $0x14] sm:$0xf]
  %v157 = vld [vmem:[%s0 + $0x18] sm:$0xf]
  %v158 = vld [vmem:[%s0 + $0x1c] sm:$0xf]
  %v159 = vld [vmem:[%s0 + $0x20] sm:$0xf]
  %v160 = vld [vmem:[%s0 + $0x24] sm:$0xf]
  %v161 = vld [vmem:[%s0 + $0x28] sm:$0xf]
  %v162 = vld [vmem:[%s0 + $0x2c] sm:$0xf]
  %v163 = vld [vmem:[%s0 + $0x30] sm:$0xf]
  %v164 = vld [vmem:[%s0 + $0x34] sm:$0xf]
  %v165 = vld [vmem:[%s0 + $0x38] sm:$0xf]
  %v166 = vld [vmem:[%s0 + $0x3c] sm:$0xf]
  %v167 = vld [vmem:[%s0 + $0x40] sm:$0xf]
  %v168 = vld [vmem:[%s0 + $0x44] sm:$0xf]
  %v169 = vld [vmem:[%s0 + $0x48] sm:$0xf]
  %v170 = vld [vmem:[%s0 + $0x4c] sm:$0xf]
  %v171 = vld [vmem:[%s0 + $0x50] sm:$0xf]
  %v172 = vld [vmem:[%s0 + $0x54] sm:$0xf]
  %v173 = vld [vmem:[%s0 + $0x58] sm:$0xf]
  %v174 = vld [vmem:[%s0 + $0x5c] sm:$0xf]
  %v175 = vld [vmem:[%s0 + $0x60] sm:$0xf]
  %v176 = vld [vmem:[%s0 + $0x64] sm:$0xf]
  %v177 = vld [vmem:[%s0 + $0x68] sm:$0xf]
  %v178 = vld [vmem:[%s0 + $0x6c] sm:$0xf]
  %v179 = vld [vmem:[%s0 + $0x70] sm:$0xf]
  %v180 = vld [vmem:[%s0 + $0x74] sm:$0xf]
  %v181 = vld [vmem:[%s0 + $0x78] sm:$0xf]
  %v182 = vld [vmem:[%s0 + $0x7c] sm:$0xf]
  %v183 = vld [vmem:[%s0 + $0x80] sm:$0xf]
  %v184 = vld [vmem:[%s0 + $0x84] sm:$0xf]
  %v185 = vld [vmem:[%s0 + $0x88] sm:$0xf]
  %v186 = vld [vmem:[%s0 + $0x8c] sm:$0xf]
  %v187 = vld [vmem:[%s0 + $0x90] sm:$0xf]
  %v188 = vld [vmem:[%s0 + $0x94] sm:$0xf]
  %v189 = vld [vmem:[%s0 + $0x98] sm:$0xf]
  %v190 = vld [vmem:[%s0 + $0x9c] sm:$0xf]
  %v191 = vld [vmem:[%s0 + $0xa0] sm:$0xf]
  %v192 = vld [vmem:[%s0 + $0xa4] sm:$0xf]
  %v193 = vld [vmem:[%s0 + $0xa8] sm:$0xf]
  %v194 = vld [vmem:[%s0 + $0xac] sm:$0xf]
  %v195 = vld [vmem:[%s0 + $0xb0] sm:$0xf]
  %v196 = vld [vmem:[%s0 + $0xb4] sm:$0xf]
  %v197 = vld [vmem:[%s0 + $0xb8] sm:$0xf]
  %v198 = vld [vmem:[%s0 + $0xbc] sm:$0xf]
  %v199 = vld [vmem:[%s0 + $0xc0] sm:$0xf]
  %v200 = vld [vmem:[%s0 + $0xc4] sm:$0xf]
  %v201 = vld [vmem:[%s0 + $0xc8] sm:$0xf]
  %v202 = vld [vmem:[%s0 + $0xcc] sm:$0xf]
  %v203 = vld [vmem:[%s0 + $0xd0] sm:$0xf]
  %v204 = vld [vmem:[%s0 + $0xd4] sm:$0xf]
  %v205 = vld [vmem:[%s0 + $0xd8] sm:$0xf]
  %v206 = vld [vmem:[%s0 + $0xdc] sm:$0xf]
  %v207 = vld [vmem:[%s0 + $0xe0] sm:$0xf]
  %v208 = vld [vmem:[%s0 + $0xe4] sm:$0xf]
  %v209 = vld [vmem:[%s0 + $0xe8] sm:$0xf]
  %v210 = vld [vmem:[%s0 + $0xec] sm:$0xf]
  %v211 = vld [vmem:[%s0 + $0xf0] sm:$0xf]
  %v212 = vld [vmem:[%s0 + $0xf4] sm:$0xf]
  %v213 = vld [vmem:[%s0 + $0xf8] sm:$0xf]
  %v214 = vld [vmem:[%s0 + $0xfc] sm:$0xf]
  %v215 = vld [vmem:[%s1] sm:$0x3]
  %v280 = vunpack.c.l.b16 %v151
  %v281 = vunpack.c.l.b16 %v152
  %v282 = vunpack.c.l.b16 %v153
  %v283 = vunpack.c.l.b16 %v154
  %v284 = vunpack.c.l.b16 %v155
  %v285 = vunpack.c.l.b16 %v156
  %v286 = vunpack.c.l.b16 %v157
  %v287 = vunpack.c.l.b16 %v158
  %v288 = vunpack.c.l.b16 %v159
  %v289 = vunpack.c.l.b16 %v160
  %v290 = vunpack.c.l.b16 %v161
  %v291 = vunpack.c.l.b16 %v162
  %v292 = vunpack.c.l.b16 %v163
  %v293 = vunpack.c.l.b16 %v164
  %v294 = vunpack.c.l.b16 %v165
  %v295 = vunpack.c.l.b16 %v166
  %v296 = vunpack.c.l.b16 %v167
  %v297 = vunpack.c.l.b16 %v168
  %v298 = vunpack.c.l.b16 %v169
  %v299 = vunpack.c.l.b16 %v170
  %v300 = vunpack.c.l.b16 %v171
  %v301 = vunpack.c.l.b16 %v172
  %v302 = vunpack.c.l.b16 %v173
  %v303 = vunpack.c.l.b16 %v174
  %v304 = vunpack.c.l.b16 %v175
  %v305 = vunpack.c.l.b16 %v176
  %v306 = vunpack.c.l.b16 %v177
  %v307 = vunpack.c.l.b16 %v178
  %v308 = vunpack.c.l.b16 %v179
  %v309 = vunpack.c.l.b16 %v180
  %v310 = vunpack.c.l.b16 %v181
  %v311 = vunpack.c.l.b16 %v182
  %v312 = vunpack.c.l.b16 %v183
  %v313 = vunpack.c.l.b16 %v184
  %v314 = vunpack.c.l.b16 %v185
  %v315 = vunpack.c.l.b16 %v186
  %v316 = vunpack.c.l.b16 %v187
  %v317 = vunpack.c.l.b16 %v188
  %v318 = vunpack.c.l.b16 %v189
  %v319 = vunpack.c.l.b16 %v190
  %v320 = vunpack.c.l.b16 %v191
  %v321 = vunpack.c.l.b16 %v192
  %v322 = vunpack.c.l.b16 %v193
  %v323 = vunpack.c.l.b16 %v194
  %v324 = vunpack.c.l.b16 %v195
  %v325 = vunpack.c.l.b16 %v196
  %v326 = vunpack.c.l.b16 %v197
  %v327 = vunpack.c.l.b16 %v198
  %v328 = vunpack.c.l.b16 %v199
  %v329 = vunpack.c.l.b16 %v200
  %v330 = vunpack.c.l.b16 %v201
  %v331 = vunpack.c.l.b16 %v202
  %v332 = vunpack.c.l.b16 %v203
  %v333 = vunpack.c.l.b16 %v204
  %v334 = vunpack.c.l.b16 %v205
  %v335 = vunpack.c.l.b16 %v206
  %v336 = vunpack.c.l.b16 %v207
  %v337 = vunpack.c.l.b16 %v208
  %v338 = vunpack.c.l.b16 %v209
  %v339 = vunpack.c.l.b16 %v210
  %v340 = vunpack.c.l.b16 %v211
  %v341 = vunpack.c.l.b16 %v212
  %v342 = vunpack.c.l.b16 %v213
  %v343 = vunpack.c.l.b16 %v214
  %v344 = vpack.c.b16 %v281, %v280
  %v345 = vpack.c.b16 %v283, %v282
  %v346 = vpack.c.b16 %v285, %v284
  %v347 = vpack.c.b16 %v287, %v286
  %v348 = vpack.c.b16 %v289, %v288
  %v349 = vpack.c.b16 %v291, %v290
  %v350 = vpack.c.b16 %v293, %v292
  %v351 = vpack.c.b16 %v295, %v294
  %v352 = vpack.c.b16 %v297, %v296
  %v353 = vpack.c.b16 %v299, %v298
  %v354 = vpack.c.b16 %v301, %v300
  %v355 = vpack.c.b16 %v303, %v302
  %v356 = vpack.c.b16 %v305, %v304
  %v357 = vpack.c.b16 %v307, %v306
  %v358 = vpack.c.b16 %v309, %v308
  %v359 = vpack.c.b16 %v311, %v310
  %v360 = vpack.c.b16 %v313, %v312
  %v361 = vpack.c.b16 %v315, %v314
  %v362 = vpack.c.b16 %v317, %v316
  %v363 = vpack.c.b16 %v319, %v318
  %v364 = vpack.c.b16 %v321, %v320
  %v365 = vpack.c.b16 %v323, %v322
  %v366 = vpack.c.b16 %v325, %v324
  %v367 = vpack.c.b16 %v327, %v326
  %v368 = vpack.c.b16 %v329, %v328
  %v369 = vpack.c.b16 %v331, %v330
  %v370 = vpack.c.b16 %v333, %v332
  %v371 = vpack.c.b16 %v335, %v334
  %v372 = vpack.c.b16 %v337, %v336
  %v373 = vpack.c.b16 %v339, %v338
  %v374 = vpack.c.b16 %v341, %v340
  %v375 = vpack.c.b16 %v343, %v342
  %vm376 = vcmask 31744
  %v378 = vsel %vm376, %v344, 0
  %v381 = vsel %vm376, %v345, 0
  %v384 = vsel %vm376, %v346, 0
  %v387 = vsel %vm376, %v347, 0
  %v390 = vsel %vm376, %v348, 0
  %v393 = vsel %vm376, %v349, 0
  %v396 = vsel %vm376, %v350, 0
  %v399 = vsel %vm376, %v351, 0
  %v402 = vsel %vm376, %v352, 0
  %v405 = vsel %vm376, %v353, 0
  %v408 = vsel %vm376, %v354, 0
  %v411 = vsel %vm376, %v355, 0
  %v414 = vsel %vm376, %v356, 0
  %v417 = vsel %vm376, %v357, 0
  %v420 = vsel %vm376, %v358, 0
  %v423 = vsel %vm376, %v359, 0
  %v426 = vsel %vm376, %v360, 0
  %v429 = vsel %vm376, %v361, 0
  %v432 = vsel %vm376, %v362, 0
  %v435 = vsel %vm376, %v363, 0
  %v438 = vsel %vm376, %v364, 0
  %v441 = vsel %vm376, %v365, 0
  %v444 = vsel %vm376, %v366, 0
  %v447 = vsel %vm376, %v367, 0
  %v450 = vsel %vm376, %v368, 0
  %v453 = vsel %vm376, %v369, 0
  %v456 = vsel %vm376, %v370, 0
  %v459 = vsel %vm376, %v371, 0
  %v462 = vsel %vm376, %v372, 0
  %v465 = vsel %vm376, %v373, 0
  %v468 = vsel %vm376, %v374, 0
  %v471 = vsel %vm376, %v375, 0
  %vm473 = vcmask 1041408
  %v475 = vsel %vm473, %v215, 0
  %477 = vmatpush.bf16.msra.mxu0 0
  %478 = vmatpush.bf16.msra.mxu0 0
  %479 = vmatpush.bf16.msra.mxu0 0
  %480 = vmatpush.bf16.msra.mxu0 0
  %481 = vmatpush.bf16.msra.mxu0 0
  %482 = vmatpush.bf16.msra.mxu0 0
  %483 = vmatpush.bf16.msra.mxu0 0
  %484 = vmatpush.bf16.msra.mxu0 %v475
  %485 = vmatmul.bf16.gmra.mxu0 %v378
  %v486 = vpop.f32.mrf.mxu0
  %v487 = vadd.f32 0.0, %v486
  %v488 = vpop.f32.mrf.mxu0
  %v489 = vadd.f32 0.0, %v488
  %490 = vmatmul.bf16.gmra.mxu0 %v381
  %v491 = vpop.f32.mrf.mxu0
  %v492 = vadd.f32 0.0, %v491
  %v493 = vpop.f32.mrf.mxu0
  %v494 = vadd.f32 0.0, %v493
  %495 = vmatmul.bf16.gmra.mxu0 %v384
  %v496 = vpop.f32.mrf.mxu0
  %v497 = vadd.f32 0.0, %v496
  %v498 = vpop.f32.mrf.mxu0
  %v499 = vadd.f32 0.0, %v498
  %500 = vmatmul.bf16.gmra.mxu0 %v387
  %v501 = vpop.f32.mrf.mxu0
  %v502 = vadd.f32 0.0, %v501
  %v503 = vpop.f32.mrf.mxu0
  %v504 = vadd.f32 0.0, %v503
  %505 = vmatmul.bf16.gmra.mxu0 %v390
  %v506 = vpop.f32.mrf.mxu0
  %v507 = vadd.f32 0.0, %v506
  %v508 = vpop.f32.mrf.mxu0
  %v509 = vadd.f32 0.0, %v508
  %510 = vmatmul.bf16.gmra.mxu0 %v393
  %v511 = vpop.f32.mrf.mxu0
  %v512 = vadd.f32 0.0, %v511
  %v513 = vpop.f32.mrf.mxu0
  %v514 = vadd.f32 0.0, %v513
  %515 = vmatmul.bf16.gmra.mxu0 %v396
  %v516 = vpop.f32.mrf.mxu0
  %v517 = vadd.f32 0.0, %v516
  %v518 = vpop.f32.mrf.mxu0
  %v519 = vadd.f32 0.0, %v518
  %520 = vmatmul.bf16.gmra.mxu0 %v399
  %v521 = vpop.f32.mrf.mxu0
  %v522 = vadd.f32 0.0, %v521
  %v523 = vpop.f32.mrf.mxu0
  %v524 = vadd.f32 0.0, %v523
  %525 = vmatmul.bf16.gmra.mxu0 %v402
  %v526 = vpop.f32.mrf.mxu0
  %v527 = vadd.f32 0.0, %v526
  %v528 = vpop.f32.mrf.mxu0
  %v529 = vadd.f32 0.0, %v528
  %530 = vmatmul.bf16.gmra.mxu0 %v405
  %v531 = vpop.f32.mrf.mxu0
  %v532 = vadd.f32 0.0, %v531
  %v533 = vpop.f32.mrf.mxu0
  %v534 = vadd.f32 0.0, %v533
  %535 = vmatmul.bf16.gmra.mxu0 %v408
  %v536 = vpop.f32.mrf.mxu0
  %v537 = vadd.f32 0.0, %v536
  %v538 = vpop.f32.mrf.mxu0
  %v539 = vadd.f32 0.0, %v538
  %540 = vmatmul.bf16.gmra.mxu0 %v411
  %v541 = vpop.f32.mrf.mxu0
  %v542 = vadd.f32 0.0, %v541
  %v543 = vpop.f32.mrf.mxu0
  %v544 = vadd.f32 0.0, %v543
  %545 = vmatmul.bf16.gmra.mxu0 %v414
  %v546 = vpop.f32.mrf.mxu0
  %v547 = vadd.f32 0.0, %v546
  %v548 = vpop.f32.mrf.mxu0
  %v549 = vadd.f32 0.0, %v548
  %550 = vmatmul.bf16.gmra.mxu0 %v417
  %v551 = vpop.f32.mrf.mxu0
  %v552 = vadd.f32 0.0, %v551
  %v553 = vpop.f32.mrf.mxu0
  %v554 = vadd.f32 0.0, %v553
  %555 = vmatmul.bf16.gmra.mxu0 %v420
  %v556 = vpop.f32.mrf.mxu0
  %v557 = vadd.f32 0.0, %v556
  %v558 = vpop.f32.mrf.mxu0
  %v559 = vadd.f32 0.0, %v558
  %560 = vmatmul.bf16.gmra.mxu0 %v423
  %v561 = vpop.f32.mrf.mxu0
  %v562 = vadd.f32 0.0, %v561
  %v563 = vpop.f32.mrf.mxu0
  %v564 = vadd.f32 0.0, %v563
  %565 = vmatmul.bf16.gmra.mxu0 %v426
  %v566 = vpop.f32.mrf.mxu0
  %v567 = vadd.f32 0.0, %v566
  %v568 = vpop.f32.mrf.mxu0
  %v569 = vadd.f32 0.0, %v568
  %570 = vmatmul.bf16.gmra.mxu0 %v429
  %v571 = vpop.f32.mrf.mxu0
  %v572 = vadd.f32 0.0, %v571
  %v573 = vpop.f32.mrf.mxu0
  %v574 = vadd.f32 0.0, %v573
  %575 = vmatmul.bf16.gmra.mxu0 %v432
  %v576 = vpop.f32.mrf.mxu0
  %v577 = vadd.f32 0.0, %v576
  %v578 = vpop.f32.mrf.mxu0
  %v579 = vadd.f32 0.0, %v578
  %580 = vmatmul.bf16.gmra.mxu0 %v435
  %v581 = vpop.f32.mrf.mxu0
  %v582 = vadd.f32 0.0, %v581
  %v583 = vpop.f32.mrf.mxu0
  %v584 = vadd.f32 0.0, %v583
  %585 = vmatmul.bf16.gmra.mxu0 %v438
  %v586 = vpop.f32.mrf.mxu0
  %v587 = vadd.f32 0.0, %v586
  %v588 = vpop.f32.mrf.mxu0
  %v589 = vadd.f32 0.0, %v588
  %590 = vmatmul.bf16.gmra.mxu0 %v441
  %v591 = vpop.f32.mrf.mxu0
  %v592 = vadd.f32 0.0, %v591
  %v593 = vpop.f32.mrf.mxu0
  %v594 = vadd.f32 0.0, %v593
  %595 = vmatmul.bf16.gmra.mxu0 %v444
  %v596 = vpop.f32.mrf.mxu0
  %v597 = vadd.f32 0.0, %v596
  %v598 = vpop.f32.mrf.mxu0
  %v599 = vadd.f32 0.0, %v598
  %600 = vmatmul.bf16.gmra.mxu0 %v447
  %v601 = vpop.f32.mrf.mxu0
  %v602 = vadd.f32 0.0, %v601
  %v603 = vpop.f32.mrf.mxu0
  %v604 = vadd.f32 0.0, %v603
  %605 = vmatmul.bf16.gmra.mxu0 %v450
  %v606 = vpop.f32.mrf.mxu0
  %v607 = vadd.f32 0.0, %v606
  %v608 = vpop.f32.mrf.mxu0
  %v609 = vadd.f32 0.0, %v608
  %610 = vmatmul.bf16.gmra.mxu0 %v453
  %v611 = vpop.f32.mrf.mxu0
  %v612 = vadd.f32 0.0, %v611
  %v613 = vpop.f32.mrf.mxu0
  %v614 = vadd.f32 0.0, %v613
  %615 = vmatmul.bf16.gmra.mxu0 %v456
  %v616 = vpop.f32.mrf.mxu0
  %v617 = vadd.f32 0.0, %v616
  %v618 = vpop.f32.mrf.mxu0
  %v619 = vadd.f32 0.0, %v618
  %620 = vmatmul.bf16.gmra.mxu0 %v459
  %v621 = vpop.f32.mrf.mxu0
  %v622 = vadd.f32 0.0, %v621
  %v623 = vpop.f32.mrf.mxu0
  %v624 = vadd.f32 0.0, %v623
  %625 = vmatmul.bf16.gmra.mxu0 %v462
  %v626 = vpop.f32.mrf.mxu0
  %v627 = vadd.f32 0.0, %v626
  %v628 = vpop.f32.mrf.mxu0
  %v629 = vadd.f32 0.0, %v628
  %630 = vmatmul.bf16.gmra.mxu0 %v465
  %v631 = vpop.f32.mrf.mxu0
  %v632 = vadd.f32 0.0, %v631
  %v633 = vpop.f32.mrf.mxu0
  %v634 = vadd.f32 0.0, %v633
  %635 = vmatmul.bf16.gmra.mxu0 %v468
  %v636 = vpop.f32.mrf.mxu0
  %v637 = vadd.f32 0.0, %v636
  %v638 = vpop.f32.mrf.mxu0
  %v639 = vadd.f32 0.0, %v638
  %640 = vmatmul.bf16.gmra.mxu0 %v471
  %v641 = vpop.f32.mrf.mxu0
  %v642 = vadd.f32 0.0, %v641
  %v643 = vpop.f32.mrf.mxu0
  %v644 = vadd.f32 0.0, %v643
  %645 = vdwg.mxu0
  %v646 = vadd.f32 %v87, %v487
  %v647 = vadd.f32 %v88, %v489
  %v648 = vadd.f32 %v89, %v492
  %v649 = vadd.f32 %v90, %v494
  %v650 = vadd.f32 %v91, %v497
  %v651 = vadd.f32 %v92, %v499
  %v652 = vadd.f32 %v93, %v502
  %v653 = vadd.f32 %v94, %v504
  %v654 = vadd.f32 %v95, %v507
  %v655 = vadd.f32 %v96, %v509
  %v656 = vadd.f32 %v97, %v512
  %v657 = vadd.f32 %v98, %v514
  %v658 = vadd.f32 %v99, %v517
  %v659 = vadd.f32 %v100, %v519
  %v660 = vadd.f32 %v101, %v522
  %v661 = vadd.f32 %v102, %v524
  %v662 = vadd.f32 %v103, %v527
  %v663 = vadd.f32 %v104, %v529
  %v664 = vadd.f32 %v105, %v532
  %v665 = vadd.f32 %v106, %v534
  %v666 = vadd.f32 %v107, %v537
  %v667 = vadd.f32 %v108, %v539
  %v668 = vadd.f32 %v109, %v542
  %v669 = vadd.f32 %v110, %v544
  %v670 = vadd.f32 %v111, %v547
  %v671 = vadd.f32 %v112, %v549
  %v672 = vadd.f32 %v113, %v552
  %v673 = vadd.f32 %v114, %v554
  %v674 = vadd.f32 %v115, %v557
  %v675 = vadd.f32 %v116, %v559
  %v676 = vadd.f32 %v117, %v562
  %v677 = vadd.f32 %v118, %v564
  %v678 = vadd.f32 %v119, %v567
  %v679 = vadd.f32 %v120, %v569
  %v680 = vadd.f32 %v121, %v572
  %v681 = vadd.f32 %v122, %v574
  %v682 = vadd.f32 %v123, %v577
  %v683 = vadd.f32 %v124, %v579
  %v684 = vadd.f32 %v125, %v582
  %v685 = vadd.f32 %v126, %v584
  %v686 = vadd.f32 %v127, %v587
  %v687 = vadd.f32 %v128, %v589
  %v688 = vadd.f32 %v129, %v592
  %v689 = vadd.f32 %v130, %v594
  %v690 = vadd.f32 %v131, %v597
  %v691 = vadd.f32 %v132, %v599
  %v692 = vadd.f32 %v133, %v602
  %v693 = vadd.f32 %v134, %v604
  %v694 = vadd.f32 %v135, %v607
  %v695 = vadd.f32 %v136, %v609
  %v696 = vadd.f32 %v137, %v612
  %v697 = vadd.f32 %v138, %v614
  %v698 = vadd.f32 %v139, %v617
  %v699 = vadd.f32 %v140, %v619
  %v700 = vadd.f32 %v141, %v622
  %v701 = vadd.f32 %v142, %v624
  %v702 = vadd.f32 %v143, %v627
  %v703 = vadd.f32 %v144, %v629
  %v704 = vadd.f32 %v145, %v632
  %v705 = vadd.f32 %v146, %v634
  %v706 = vadd.f32 %v147, %v637
  %v707 = vadd.f32 %v148, %v639
  %v708 = vadd.f32 %v149, %v642
  %v709 = vadd.f32 %v150, %v644
  %710 = vst.msk [vmem:[#allocation2] sm:$0xff] %vm376, %v646
  %711 = vst.msk [vmem:[#allocation2 + $0x8] sm:$0xff] %vm376, %v647
  %712 = vst.msk [vmem:[#allocation2 + $0x10] sm:$0xff] %vm376, %v648
  %713 = vst.msk [vmem:[#allocation2 + $0x18] sm:$0xff] %vm376, %v649
  %714 = vst.msk [vmem:[#allocation2 + $0x20] sm:$0xff] %vm376, %v650
  %715 = vst.msk [vmem:[#allocation2 + $0x28] sm:$0xff] %vm376, %v651
  %716 = vst.msk [vmem:[#allocation2 + $0x30] sm:$0xff] %vm376, %v652
  %717 = vst.msk [vmem:[#allocation2 + $0x38] sm:$0xff] %vm376, %v653
  %718 = vst.msk [vmem:[#allocation2 + $0x40] sm:$0xff] %vm376, %v654
  %719 = vst.msk [vmem:[#allocation2 + $0x48] sm:$0xff] %vm376, %v655
  %720 = vst.msk [vmem:[#allocation2 + $0x50] sm:$0xff] %vm376, %v656
  %721 = vst.msk [vmem:[#allocation2 + $0x58] sm:$0xff] %vm376, %v657
  %722 = vst.msk [vmem:[#allocation2 + $0x60] sm:$0xff] %vm376, %v658
  %723 = vst.msk [vmem:[#allocation2 + $0x68] sm:$0xff] %vm376, %v659
  %724 = vst.msk [vmem:[#allocation2 + $0x70] sm:$0xff] %vm376, %v660
  %725 = vst.msk [vmem:[#allocation2 + $0x78] sm:$0xff] %vm376, %v661
  %726 = vst.msk [vmem:[#allocation2 + $0x80] sm:$0xff] %vm376, %v662
  %727 = vst.msk [vmem:[#allocation2 + $0x88] sm:$0xff] %vm376, %v663
  %728 = vst.msk [vmem:[#allocation2 + $0x90] sm:$0xff] %vm376, %v664
  %729 = vst.msk [vmem:[#allocation2 + $0x98] sm:$0xff] %vm376, %v665
  %730 = vst.msk [vmem:[#allocation2 + $0xa0] sm:$0xff] %vm376, %v666
  %731 = vst.msk [vmem:[#allocation2 + $0xa8] sm:$0xff] %vm376, %v667
  %732 = vst.msk [vmem:[#allocation2 + $0xb0] sm:$0xff] %vm376, %v668
  %733 = vst.msk [vmem:[#allocation2 + $0xb8] sm:$0xff] %vm376, %v669
  %734 = vst.msk [vmem:[#allocation2 + $0xc0] sm:$0xff] %vm376, %v670
  %735 = vst.msk [vmem:[#allocation2 + $0xc8] sm:$0xff] %vm376, %v671
  %736 = vst.msk [vmem:[#allocation2 + $0xd0] sm:$0xff] %vm376, %v672
  %737 = vst.msk [vmem:[#allocation2 + $0xd8] sm:$0xff] %vm376, %v673
  %738 = vst.msk [vmem:[#allocation2 + $0xe0] sm:$0xff] %vm376, %v674
  %739 = vst.msk [vmem:[#allocation2 + $0xe8] sm:$0xff] %vm376, %v675
  %740 = vst.msk [vmem:[#allocation2 + $0xf0] sm:$0xff] %vm376, %v676
  %741 = vst.msk [vmem:[#allocation2 + $0xf8] sm:$0xff] %vm376, %v677
  %742 = vst.msk [vmem:[#allocation2 + $0x100] sm:$0xff] %vm376, %v678
  %743 = vst.msk [vmem:[#allocation2 + $0x108] sm:$0xff] %vm376, %v679
  %744 = vst.msk [vmem:[#allocation2 + $0x110] sm:$0xff] %vm376, %v680
  %745 = vst.msk [vmem:[#allocation2 + $0x118] sm:$0xff] %vm376, %v681
  %746 = vst.msk [vmem:[#allocation2 + $0x120] sm:$0xff] %vm376, %v682
  %747 = vst.msk [vmem:[#allocation2 + $0x128] sm:$0xff] %vm376, %v683
  %748 = vst.msk [vmem:[#allocation2 + $0x130] sm:$0xff] %vm376, %v684
  %749 = vst.msk [vmem:[#allocation2 + $0x138] sm:$0xff] %vm376, %v685
  %750 = vst.msk [vmem:[#allocation2 + $0x140] sm:$0xff] %vm376, %v686
  %751 = vst.msk [vmem:[#allocation2 + $0x148] sm:$0xff] %vm376, %v687
  %752 = vst.msk [vmem:[#allocation2 + $0x150] sm:$0xff] %vm376, %v688
  %753 = vst.msk [vmem:[#allocation2 + $0x158] sm:$0xff] %vm376, %v689
  %754 = vst.msk [vmem:[#allocation2 + $0x160] sm:$0xff] %vm376, %v690
  %755 = vst.msk [vmem:[#allocation2 + $0x168] sm:$0xff] %vm376, %v691
  %756 = vst.msk [vmem:[#allocation2 + $0x170] sm:$0xff] %vm376, %v692
  %757 = vst.msk [vmem:[#allocation2 + $0x178] sm:$0xff] %vm376, %v693
  %758 = vst.msk [vmem:[#allocation2 + $0x180] sm:$0xff] %vm376, %v694
  %759 = vst.msk [vmem:[#allocation2 + $0x188] sm:$0xff] %vm376, %v695
  %760 = vst.msk [vmem:[#allocation2 + $0x190] sm:$0xff] %vm376, %v696
  %761 = vst.msk [vmem:[#allocation2 + $0x198] sm:$0xff] %vm376, %v697
  %762 = vst.msk [vmem:[#allocation2 + $0x1a0] sm:$0xff] %vm376, %v698
  %763 = vst.msk [vmem:[#allocation2 + $0x1a8] sm:$0xff] %vm376, %v699
  %764 = vst.msk [vmem:[#allocation2 + $0x1b0] sm:$0xff] %vm376, %v700
  %765 = vst.msk [vmem:[#allocation2 + $0x1b8] sm:$0xff] %vm376, %v701
  %766 = vst.msk [vmem:[#allocation2 + $0x1c0] sm:$0xff] %vm376, %v702
  %767 = vst.msk [vmem:[#allocation2 + $0x1c8] sm:$0xff] %vm376, %v703
  %768 = vst.msk [vmem:[#allocation2 + $0x1d0] sm:$0xff] %vm376, %v704
  %769 = vst.msk [vmem:[#allocation2 + $0x1d8] sm:$0xff] %vm376, %v705
  %770 = vst.msk [vmem:[#allocation2 + $0x1e0] sm:$0xff] %vm376, %v706
  %771 = vst.msk [vmem:[#allocation2 + $0x1e8] sm:$0xff] %vm376, %v707
  %772 = vst.msk [vmem:[#allocation2 + $0x1f0] sm:$0xff] %vm376, %v708
  %773 = vst.msk [vmem:[#allocation2 + $0x1f8] sm:$0xff] %vm376, %v709
  // Predicated region
  $region22: #{tpu_custom_call.1} parent=0 // pred_check
    %p774 = pneg %p18
  $region23: #{tpu_custom_call.1} parent=0 // pred_check_branch
    %776 = sbr.rel (%p774) target = $region25
  $region24: #{tpu_custom_call.1} parent=0 // pred_region
    %v777 = vld [vmem:[#allocation2] sm:$0xff]
    %v778 = vld [vmem:[#allocation2 + $0x8] sm:$0xff]
    %v779 = vld [vmem:[#allocation2 + $0x10] sm:$0xff]
    %v780 = vld [vmem:[#allocation2 + $0x18] sm:$0xff]
    %v781 = vld [vmem:[#allocation2 + $0x20] sm:$0xff]
    %v782 = vld [vmem:[#allocation2 + $0x28] sm:$0xff]
    %v783 = vld [vmem:[#allocation2 + $0x30] sm:$0xff]
    %v784 = vld [vmem:[#allocation2 + $0x38] sm:$0xff]
    %v785 = vld [vmem:[#allocation2 + $0x40] sm:$0xff]
    %v786 = vld [vmem:[#allocation2 + $0x48] sm:$0xff]
    %v787 = vld [vmem:[#allocation2 + $0x50] sm:$0xff]
    %v788 = vld [vmem:[#allocation2 + $0x58] sm:$0xff]
    %v789 = vld [vmem:[#allocation2 + $0x60] sm:$0xff]
    %v790 = vld [vmem:[#allocation2 + $0x68] sm:$0xff]
    %v791 = vld [vmem:[#allocation2 + $0x70] sm:$0xff]
    %v792 = vld [vmem:[#allocation2 + $0x78] sm:$0xff]
    %v793 = vld [vmem:[#allocation2 + $0x80] sm:$0xff]
    %v794 = vld [vmem:[#allocation2 + $0x88] sm:$0xff]
    %v795 = vld [vmem:[#allocation2 + $0x90] sm:$0xff]
    %v796 = vld [vmem:[#allocation2 + $0x98] sm:$0xff]
    %v797 = vld [vmem:[#allocation2 + $0xa0] sm:$0xff]
    %v798 = vld [vmem:[#allocation2 + $0xa8] sm:$0xff]
    %v799 = vld [vmem:[#allocation2 + $0xb0] sm:$0xff]
    %v800 = vld [vmem:[#allocation2 + $0xb8] sm:$0xff]
    %v801 = vld [vmem:[#allocation2 + $0xc0] sm:$0xff]
    %v802 = vld [vmem:[#allocation2 + $0xc8] sm:$0xff]
    %v803 = vld [vmem:[#allocation2 + $0xd0] sm:$0xff]
    %v804 = vld [vmem:[#allocation2 + $0xd8] sm:$0xff]
    %v805 = vld [vmem:[#allocation2 + $0xe0] sm:$0xff]
    %v806 = vld [vmem:[#allocation2 + $0xe8] sm:$0xff]
    %v807 = vld [vmem:[#allocation2 + $0xf0] sm:$0xff]
    %v808 = vld [vmem:[#allocation2 + $0xf8] sm:$0xff]
    %v809 = vld [vmem:[#allocation2 + $0x100] sm:$0xff]
    %v810 = vld [vmem:[#allocation2 + $0x108] sm:$0xff]
    %v811 = vld [vmem:[#allocation2 + $0x110] sm:$0xff]
    %v812 = vld [vmem:[#allocation2 + $0x118] sm:$0xff]
    %v813 = vld [vmem:[#allocation2 + $0x120] sm:$0xff]
    %v814 = vld [vmem:[#allocation2 + $0x128] sm:$0xff]
    %v815 = vld [vmem:[#allocation2 + $0x130] sm:$0xff]
    %v816 = vld [vmem:[#allocation2 + $0x138] sm:$0xff]
    %v817 = vld [vmem:[#allocation2 + $0x140] sm:$0xff]
    %v818 = vld [vmem:[#allocation2 + $0x148] sm:$0xff]
    %v819 = vld [vmem:[#allocation2 + $0x150] sm:$0xff]
    %v820 = vld [vmem:[#allocation2 + $0x158] sm:$0xff]
    %v821 = vld [vmem:[#allocation2 + $0x160] sm:$0xff]
    %v822 = vld [vmem:[#allocation2 + $0x168] sm:$0xff]
    %v823 = vld [vmem:[#allocation2 + $0x170] sm:$0xff]
    %v824 = vld [vmem:[#allocation2 + $0x178] sm:$0xff]
    %v825 = vld [vmem:[#allocation2 + $0x180] sm:$0xff]
    %v826 = vld [vmem:[#allocation2 + $0x188] sm:$0xff]
    %v827 = vld [vmem:[#allocation2 + $0x190] sm:$0xff]
    %v828 = vld [vmem:[#allocation2 + $0x198] sm:$0xff]
    %v829 = vld [vmem:[#allocation2 + $0x1a0] sm:$0xff]
    %v830 = vld [vmem:[#allocation2 + $0x1a8] sm:$0xff]
    %v831 = vld [vmem:[#allocation2 + $0x1b0] sm:$0xff]
    %v832 = vld [vmem:[#allocation2 + $0x1b8] sm:$0xff]
    %v833 = vld [vmem:[#allocation2 + $0x1c0] sm:$0xff]
    %v834 = vld [vmem:[#allocation2 + $0x1c8] sm:$0xff]
    %v835 = vld [vmem:[#allocation2 + $0x1d0] sm:$0xff]
    %v836 = vld [vmem:[#allocation2 + $0x1d8] sm:$0xff]
    %v837 = vld [vmem:[#allocation2 + $0x1e0] sm:$0xff]
    %v838 = vld [vmem:[#allocation2 + $0x1e8] sm:$0xff]
    %v839 = vld [vmem:[#allocation2 + $0x1f0] sm:$0xff]
    %v840 = vld [vmem:[#allocation2 + $0x1f8] sm:$0xff]
    %v841 = vld [vmem:[%s2] sm:$0x1]
    %v843 = vperm.slane %v841, 0
    %v845 = vmul.f32 %v777, %v843
    %v846 = vmul.f32 %v778, %v843
    %v847 = vmul.f32 %v779, %v843
    %v848 = vmul.f32 %v780, %v843
    %v849 = vmul.f32 %v781, %v843
    %v850 = vmul.f32 %v782, %v843
    %v851 = vmul.f32 %v783, %v843
    %v852 = vmul.f32 %v784, %v843
    %v853 = vmul.f32 %v785, %v843
    %v854 = vmul.f32 %v786, %v843
    %v855 = vmul.f32 %v787, %v843
    %v856 = vmul.f32 %v788, %v843
    %v857 = vmul.f32 %v789, %v843
    %v858 = vmul.f32 %v790, %v843
    %v859 = vmul.f32 %v791, %v843
    %v860 = vmul.f32 %v792, %v843
    %v861 = vmul.f32 %v793, %v843
    %v862 = vmul.f32 %v794, %v843
    %v863 = vmul.f32 %v795, %v843
    %v864 = vmul.f32 %v796, %v843
    %v865 = vmul.f32 %v797, %v843
    %v866 = vmul.f32 %v798, %v843
    %v867 = vmul.f32 %v799, %v843
    %v868 = vmul.f32 %v800, %v843
    %v869 = vmul.f32 %v801, %v843
    %v870 = vmul.f32 %v802, %v843
    %v871 = vmul.f32 %v803, %v843
    %v872 = vmul.f32 %v804, %v843
    %v873 = vmul.f32 %v805, %v843
    %v874 = vmul.f32 %v806, %v843
    %v875 = vmul.f32 %v807, %v843
    %v876 = vmul.f32 %v808, %v843
    %v877 = vmul.f32 %v809, %v843
    %v878 = vmul.f32 %v810, %v843
    %v879 = vmul.f32 %v811, %v843
    %v880 = vmul.f32 %v812, %v843
    %v881 = vmul.f32 %v813, %v843
    %v882 = vmul.f32 %v814, %v843
    %v883 = vmul.f32 %v815, %v843
    %v884 = vmul.f32 %v816, %v843
    %v885 = vmul.f32 %v817, %v843
    %v886 = vmul.f32 %v818, %v843
    %v887 = vmul.f32 %v819, %v843
    %v888 = vmul.f32 %v820, %v843
    %v889 = vmul.f32 %v821, %v843
    %v890 = vmul.f32 %v822, %v843
    %v891 = vmul.f32 %v823, %v843
    %v892 = vmul.f32 %v824, %v843
    %v893 = vmul.f32 %v825, %v843
    %v894 = vmul.f32 %v826, %v843
    %v895 = vmul.f32 %v827, %v843
    %v896 = vmul.f32 %v828, %v843
    %v897 = vmul.f32 %v829, %v843
    %v898 = vmul.f32 %v830, %v843
    %v899 = vmul.f32 %v831, %v843
    %v900 = vmul.f32 %v832, %v843
    %v901 = vmul.f32 %v833, %v843
    %v902 = vmul.f32 %v834, %v843
    %v903 = vmul.f32 %v835, %v843
    %v904 = vmul.f32 %v836, %v843
    %v905 = vmul.f32 %v837, %v843
    %v906 = vmul.f32 %v838, %v843
    %v907 = vmul.f32 %v839, %v843
    %v908 = vmul.f32 %v840, %v843
    %v909 = vld [vmem:[%s3] sm:$0x1]
    %v911 = vperm.slane %v909, 0
    %v913 = vadd.f32 %v845, %v911
    %v914 = vadd.f32 %v846, %v911
    %v915 = vadd.f32 %v847, %v911
    %v916 = vadd.f32 %v848, %v911
    %v917 = vadd.f32 %v849, %v911
    %v918 = vadd.f32 %v850, %v911
    %v919 = vadd.f32 %v851, %v911
    %v920 = vadd.f32 %v852, %v911
    %v921 = vadd.f32 %v853, %v911
    %v922 = vadd.f32 %v854, %v911
    %v923 = vadd.f32 %v855, %v911
    %v924 = vadd.f32 %v856, %v911
    %v925 = vadd.f32 %v857, %v911
    %v926 = vadd.f32 %v858, %v911
    %v927 = vadd.f32 %v859, %v911
    %v928 = vadd.f32 %v860, %v911
    %v929 = vadd.f32 %v861, %v911
    %v930 = vadd.f32 %v862, %v911
    %v931 = vadd.f32 %v863, %v911
    %v932 = vadd.f32 %v864, %v911
    %v933 = vadd.f32 %v865, %v911
    %v934 = vadd.f32 %v866, %v911
    %v935 = vadd.f32 %v867, %v911
    %v936 = vadd.f32 %v868, %v911
    %v937 = vadd.f32 %v869, %v911
    %v938 = vadd.f32 %v870, %v911
    %v939 = vadd.f32 %v871, %v911
    %v940 = vadd.f32 %v872, %v911
    %v941 = vadd.f32 %v873, %v911
    %v942 = vadd.f32 %v874, %v911
    %v943 = vadd.f32 %v875, %v911
    %v944 = vadd.f32 %v876, %v911
    %v945 = vadd.f32 %v877, %v911
    %v946 = vadd.f32 %v878, %v911
    %v947 = vadd.f32 %v879, %v911
    %v948 = vadd.f32 %v880, %v911
    %v949 = vadd.f32 %v881, %v911
    %v950 = vadd.f32 %v882, %v911
    %v951 = vadd.f32 %v883, %v911
    %v952 = vadd.f32 %v884, %v911
    %v953 = vadd.f32 %v885, %v911
    %v954 = vadd.f32 %v886, %v911
    %v955 = vadd.f32 %v887, %v911
    %v956 = vadd.f32 %v888, %v911
    %v957 = vadd.f32 %v889, %v911
    %v958 = vadd.f32 %v890, %v911
    %v959 = vadd.f32 %v891, %v911
    %v960 = vadd.f32 %v892, %v911
    %v961 = vadd.f32 %v893, %v911
    %v962 = vadd.f32 %v894, %v911
    %v963 = vadd.f32 %v895, %v911
    %v964 = vadd.f32 %v896, %v911
    %v965 = vadd.f32 %v897, %v911
    %v966 = vadd.f32 %v898, %v911
    %v967 = vadd.f32 %v899, %v911
    %v968 = vadd.f32 %v900, %v911
    %v969 = vadd.f32 %v901, %v911
    %v970 = vadd.f32 %v902, %v911
    %v971 = vadd.f32 %v903, %v911
    %v972 = vadd.f32 %v904, %v911
    %v973 = vadd.f32 %v905, %v911
    %v974 = vadd.f32 %v906, %v911
    %v975 = vadd.f32 %v907, %v911
    %v976 = vadd.f32 %v908, %v911
    %v977 = vmax.f32 %v913, 0.0
    %v978 = vmax.f32 %v914, 0.0
    %v979 = vmax.f32 %v915, 0.0
    %v980 = vmax.f32 %v916, 0.0
    %v981 = vmax.f32 %v917, 0.0
    %v982 = vmax.f32 %v918, 0.0
    %v983 = vmax.f32 %v919, 0.0
    %v984 = vmax.f32 %v920, 0.0
    %v985 = vmax.f32 %v921, 0.0
    %v986 = vmax.f32 %v922, 0.0
    %v987 = vmax.f32 %v923, 0.0
    %v988 = vmax.f32 %v924, 0.0
    %v989 = vmax.f32 %v925, 0.0
    %v990 = vmax.f32 %v926, 0.0
    %v991 = vmax.f32 %v927, 0.0
    %v992 = vmax.f32 %v928, 0.0
    %v993 = vmax.f32 %v929, 0.0
    %v994 = vmax.f32 %v930, 0.0
    %v995 = vmax.f32 %v931, 0.0
    %v996 = vmax.f32 %v932, 0.0
    %v997 = vmax.f32 %v933, 0.0
    %v998 = vmax.f32 %v934, 0.0
    %v999 = vmax.f32 %v935, 0.0
    %v1000 = vmax.f32 %v936, 0.0
    %v1001 = vmax.f32 %v937, 0.0
    %v1002 = vmax.f32 %v938, 0.0
    %v1003 = vmax.f32 %v939, 0.0
    %v1004 = vmax.f32 %v940, 0.0
    %v1005 = vmax.f32 %v941, 0.0
    %v1006 = vmax.f32 %v942, 0.0
    %v1007 = vmax.f32 %v943, 0.0
    %v1008 = vmax.f32 %v944, 0.0
    %v1009 = vmax.f32 %v945, 0.0
    %v1010 = vmax.f32 %v946, 0.0
    %v1011 = vmax.f32 %v947, 0.0
    %v1012 = vmax.f32 %v948, 0.0
    %v1013 = vmax.f32 %v949, 0.0
    %v1014 = vmax.f32 %v950, 0.0
    %v1015 = vmax.f32 %v951, 0.0
    %v1016 = vmax.f32 %v952, 0.0
    %v1017 = vmax.f32 %v953, 0.0
    %v1018 = vmax.f32 %v954, 0.0
    %v1019 = vmax.f32 %v955, 0.0
    %v1020 = vmax.f32 %v956, 0.0
    %v1021 = vmax.f32 %v957, 0.0
    %v1022 = vmax.f32 %v958, 0.0
    %v1023 = vmax.f32 %v959, 0.0
    %v1024 = vmax.f32 %v960, 0.0
    %v1025 = vmax.f32 %v961, 0.0
    %v1026 = vmax.f32 %v962, 0.0
    %v1027 = vmax.f32 %v963, 0.0
    %v1028 = vmax.f32 %v964, 0.0
    %v1029 = vmax.f32 %v965, 0.0
    %v1030 = vmax.f32 %v966, 0.0
    %v1031 = vmax.f32 %v967, 0.0
    %v1032 = vmax.f32 %v968, 0.0
    %v1033 = vmax.f32 %v969, 0.0
    %v1034 = vmax.f32 %v970, 0.0
    %v1035 = vmax.f32 %v971, 0.0
    %v1036 = vmax.f32 %v972, 0.0
    %v1037 = vmax.f32 %v973, 0.0
    %v1038 = vmax.f32 %v974, 0.0
    %v1039 = vmax.f32 %v975, 0.0
    %v1040 = vmax.f32 %v976, 0.0
    %v1041 = vpack.c.bf16 %v977, %v977
    %v1042 = vpack.c.bf16 %v978, %v978
    %v1043 = vpack.c.bf16 %v979, %v979
    %v1044 = vpack.c.bf16 %v980, %v980
    %v1045 = vpack.c.bf16 %v981, %v981
    %v1046 = vpack.c.bf16 %v982, %v982
    %v1047 = vpack.c.bf16 %v983, %v983
    %v1048 = vpack.c.bf16 %v984, %v984
    %v1049 = vpack.c.bf16 %v985, %v985
    %v1050 = vpack.c.bf16 %v986, %v986
    %v1051 = vpack.c.bf16 %v987, %v987
    %v1052 = vpack.c.bf16 %v988, %v988
    %v1053 = vpack.c.bf16 %v989, %v989
    %v1054 = vpack.c.bf16 %v990, %v990
    %v1055 = vpack.c.bf16 %v991, %v991
    %v1056 = vpack.c.bf16 %v992, %v992
    %v1057 = vpack.c.bf16 %v993, %v993
    %v1058 = vpack.c.bf16 %v994, %v994
    %v1059 = vpack.c.bf16 %v995, %v995
    %v1060 = vpack.c.bf16 %v996, %v996
    %v1061 = vpack.c.bf16 %v997, %v997
    %v1062 = vpack.c.bf16 %v998, %v998
    %v1063 = vpack.c.bf16 %v999, %v999
    %v1064 = vpack.c.bf16 %v1000, %v1000
    %v1065 = vpack.c.bf16 %v1001, %v1001
    %v1066 = vpack.c.bf16 %v1002, %v1002
    %v1067 = vpack.c.bf16 %v1003, %v1003
    %v1068 = vpack.c.bf16 %v1004, %v1004
    %v1069 = vpack.c.bf16 %v1005, %v1005
    %v1070 = vpack.c.bf16 %v1006, %v1006
    %v1071 = vpack.c.bf16 %v1007, %v1007
    %v1072 = vpack.c.bf16 %v1008, %v1008
    %v1073 = vpack.c.bf16 %v1009, %v1009
    %v1074 = vpack.c.bf16 %v1010, %v1010
    %v1075 = vpack.c.bf16 %v1011, %v1011
    %v1076 = vpack.c.bf16 %v1012, %v1012
    %v1077 = vpack.c.bf16 %v1013, %v1013
    %v1078 = vpack.c.bf16 %v1014, %v1014
    %v1079 = vpack.c.bf16 %v1015, %v1015
    %v1080 = vpack.c.bf16 %v1016, %v1016
    %v1081 = vpack.c.bf16 %v1017, %v1017
    %v1082 = vpack.c.bf16 %v1018, %v1018
    %v1083 = vpack.c.bf16 %v1019, %v1019
    %v1084 = vpack.c.bf16 %v1020, %v1020
    %v1085 = vpack.c.bf16 %v1021, %v1021
    %v1086 = vpack.c.bf16 %v1022, %v1022
    %v1087 = vpack.c.bf16 %v1023, %v1023
    %v1088 = vpack.c.bf16 %v1024, %v1024
    %v1089 = vpack.c.bf16 %v1025, %v1025
    %v1090 = vpack.c.bf16 %v1026, %v1026
    %v1091 = vpack.c.bf16 %v1027, %v1027
    %v1092 = vpack.c.bf16 %v1028, %v1028
    %v1093 = vpack.c.bf16 %v1029, %v1029
    %v1094 = vpack.c.bf16 %v1030, %v1030
    %v1095 = vpack.c.bf16 %v1031, %v1031
    %v1096 = vpack.c.bf16 %v1032, %v1032
    %v1097 = vpack.c.bf16 %v1033, %v1033
    %v1098 = vpack.c.bf16 %v1034, %v1034
    %v1099 = vpack.c.bf16 %v1035, %v1035
    %v1100 = vpack.c.bf16 %v1036, %v1036
    %v1101 = vpack.c.bf16 %v1037, %v1037
    %v1102 = vpack.c.bf16 %v1038, %v1038
    %v1103 = vpack.c.bf16 %v1039, %v1039
    %v1104 = vpack.c.bf16 %v1040, %v1040
    %vm1105 = vcmask 27648
    %1106 = vst.msk [vmem:[%s4] sm:$0xf] %vm1105, %v1041
    %1107 = vst.msk [vmem:[%s4 + $0x4] sm:$0xf] %vm1105, %v1042
    %1108 = vst.msk [vmem:[%s4 + $0x8] sm:$0xf] %vm1105, %v1043
    %1109 = vst.msk [vmem:[%s4 + $0xc] sm:$0xf] %vm1105, %v1044
    %1110 = vst.msk [vmem:[%s4 + $0x10] sm:$0xf] %vm1105, %v1045
    %1111 = vst.msk [vmem:[%s4 + $0x14] sm:$0xf] %vm1105, %v1046
    %1112 = vst.msk [vmem:[%s4 + $0x18] sm:$0xf] %vm1105, %v1047
    %1113 = vst.msk [vmem:[%s4 + $0x1c] sm:$0xf] %vm1105, %v1048
    %1114 = vst.msk [vmem:[%s4 + $0x20] sm:$0xf] %vm1105, %v1049
    %1115 = vst.msk [vmem:[%s4 + $0x24] sm:$0xf] %vm1105, %v1050
    %1116 = vst.msk [vmem:[%s4 + $0x28] sm:$0xf] %vm1105, %v1051
    %1117 = vst.msk [vmem:[%s4 + $0x2c] sm:$0xf] %vm1105, %v1052
    %1118 = vst.msk [vmem:[%s4 + $0x30] sm:$0xf] %vm1105, %v1053
    %1119 = vst.msk [vmem:[%s4 + $0x34] sm:$0xf] %vm1105, %v1054
    %1120 = vst.msk [vmem:[%s4 + $0x38] sm:$0xf] %vm1105, %v1055
    %1121 = vst.msk [vmem:[%s4 + $0x3c] sm:$0xf] %vm1105, %v1056
    %1122 = vst.msk [vmem:[%s4 + $0x40] sm:$0xf] %vm1105, %v1057
    %1123 = vst.msk [vmem:[%s4 + $0x44] sm:$0xf] %vm1105, %v1058
    %1124 = vst.msk [vmem:[%s4 + $0x48] sm:$0xf] %vm1105, %v1059
    %1125 = vst.msk [vmem:[%s4 + $0x4c] sm:$0xf] %vm1105, %v1060
    %1126 = vst.msk [vmem:[%s4 + $0x50] sm:$0xf] %vm1105, %v1061
    %1127 = vst.msk [vmem:[%s4 + $0x54] sm:$0xf] %vm1105, %v1062
    %1128 = vst.msk [vmem:[%s4 + $0x58] sm:$0xf] %vm1105, %v1063
    %1129 = vst.msk [vmem:[%s4 + $0x5c] sm:$0xf] %vm1105, %v1064
    %1130 = vst.msk [vmem:[%s4 + $0x60] sm:$0xf] %vm1105, %v1065
    %1131 = vst.msk [vmem:[%s4 + $0x64] sm:$0xf] %vm1105, %v1066
    %1132 = vst.msk [vmem:[%s4 + $0x68] sm:$0xf] %vm1105, %v1067
    %1133 = vst.msk [vmem:[%s4 + $0x6c] sm:$0xf] %vm1105, %v1068
    %1134 = vst.msk [vmem:[%s4 + $0x70] sm:$0xf] %vm1105, %v1069
    %1135 = vst.msk [vmem:[%s4 + $0x74] sm:$0xf] %vm1105, %v1070
    %1136 = vst.msk [vmem:[%s4 + $0x78] sm:$0xf] %vm1105, %v1071
    %1137 = vst.msk [vmem:[%s4 + $0x7c] sm:$0xf] %vm1105, %v1072
    %1138 = vst.msk [vmem:[%s4 + $0x80] sm:$0xf] %vm1105, %v1073
    %1139 = vst.msk [vmem:[%s4 + $0x84] sm:$0xf] %vm1105, %v1074
    %1140 = vst.msk [vmem:[%s4 + $0x88] sm:$0xf] %vm1105, %v1075
    %1141 = vst.msk [vmem:[%s4 + $0x8c] sm:$0xf] %vm1105, %v1076
    %1142 = vst.msk [vmem:[%s4 + $0x90] sm:$0xf] %vm1105, %v1077
    %1143 = vst.msk [vmem:[%s4 + $0x94] sm:$0xf] %vm1105, %v1078
    %1144 = vst.msk [vmem:[%s4 + $0x98] sm:$0xf] %vm1105, %v1079
    %1145 = vst.msk [vmem:[%s4 + $0x9c] sm:$0xf] %vm1105, %v1080
    %1146 = vst.msk [vmem:[%s4 + $0xa0] sm:$0xf] %vm1105, %v1081
    %1147 = vst.msk [vmem:[%s4 + $0xa4] sm:$0xf] %vm1105, %v1082
    %1148 = vst.msk [vmem:[%s4 + $0xa8] sm:$0xf] %vm1105, %v1083
    %1149 = vst.msk [vmem:[%s4 + $0xac] sm:$0xf] %vm1105, %v1084
    %1150 = vst.msk [vmem:[%s4 + $0xb0] sm:$0xf] %vm1105, %v1085
    %1151 = vst.msk [vmem:[%s4 + $0xb4] sm:$0xf] %vm1105, %v1086
    %1152 = vst.msk [vmem:[%s4 + $0xb8] sm:$0xf] %vm1105, %v1087
    %1153 = vst.msk [vmem:[%s4 + $0xbc] sm:$0xf] %vm1105, %v1088
    %1154 = vst.msk [vmem:[%s4 + $0xc0] sm:$0xf] %vm1105, %v1089
    %1155 = vst.msk [vmem:[%s4 + $0xc4] sm:$0xf] %vm1105, %v1090
    %1156 = vst.msk [vmem:[%s4 + $0xc8] sm:$0xf] %vm1105, %v1091
    %1157 = vst.msk [vmem:[%s4 + $0xcc] sm:$0xf] %vm1105, %v1092
    %1158 = vst.msk [vmem:[%s4 + $0xd0] sm:$0xf] %vm1105, %v1093
    %1159 = vst.msk [vmem:[%s4 + $0xd4] sm:$0xf] %vm1105, %v1094
    %1160 = vst.msk [vmem:[%s4 + $0xd8] sm:$0xf] %vm1105, %v1095
    %1161 = vst.msk [vmem:[%s4 + $0xdc] sm:$0xf] %vm1105, %v1096
    %1162 = vst.msk [vmem:[%s4 + $0xe0] sm:$0xf] %vm1105, %v1097
    %1163 = vst.msk [vmem:[%s4 + $0xe4] sm:$0xf] %vm1105, %v1098
    %1164 = vst.msk [vmem:[%s4 + $0xe8] sm:$0xf] %vm1105, %v1099
    %1165 = vst.msk [vmem:[%s4 + $0xec] sm:$0xf] %vm1105, %v1100
    %1166 = vst.msk [vmem:[%s4 + $0xf0] sm:$0xf] %vm1105, %v1101
    %1167 = vst.msk [vmem:[%s4 + $0xf4] sm:$0xf] %vm1105, %v1102
    %1168 = vst.msk [vmem:[%s4 + $0xf8] sm:$0xf] %vm1105, %v1103
    %1169 = vst.msk [vmem:[%s4 + $0xfc] sm:$0xf] %vm1105, %v1104
  $region25: #{tpu_custom_call.1} parent=0 // pred_fallthru
    _
  // Predicated region
  $region26: #{tpu_custom_call.1} parent=0 // pred_check
    _
  $region27: #{tpu_custom_call.1} parent=0 // pred_check_branch
    %1171 = sbr.rel (0) target = $region29
  $region28: #{tpu_custom_call.1} parent=0 // pred_region
    _
  $region29: #{tpu_custom_call.1} parent=0 // pred_fallthru
    _
  // Predicated region
  $region30: #{tpu_custom_call.1} parent=0 // pred_check
    _
  $region31: #{tpu_custom_call.1} parent=0 // pred_check_branch
    %1173 = sbr.rel (0) target = $region33
  $region32: #{tpu_custom_call.1} parent=0 // pred_region
    _
  $region33: #{tpu_custom_call.1} parent=0 // pred_fallthru
    _

</llo_original>
